<compile_context>
chip_gen: v6e
topology: v6e:2x2x1
jax: 0.10.0
libtpu: 0.0.40
codegen_flags: <defaults>
</compile_context>

<pallas_src>
import jax
import jax.numpy as jnp
from jax.experimental import pallas as pl
from jax.experimental.pallas import tpu as pltpu


def _dma_copy_kernel(x_hbm, o_hbm, sem):
    # Single direct HBM -> HBM DMA covering the whole array (no VMEM bounce).
    cp = pltpu.make_async_copy(x_hbm, o_hbm, sem)
    cp.start()
    cp.wait()


def _pallas_identity_copy(x):
    """Materialized identity copy of `x` via one HBM->HBM DMA (roofline-bound)."""
    return pl.pallas_call(
        _dma_copy_kernel,
        out_shape=jax.ShapeDtypeStruct(x.shape, x.dtype),
        in_specs=[pl.BlockSpec(memory_space=pl.ANY)],
        out_specs=pl.BlockSpec(memory_space=pl.ANY),
        scratch_shapes=[pltpu.SemaphoreType.DMA(())],
    )(x)


def text_token_adapter(context, materialize=False):
    """Pallas-backed equivalent of TextTokenAdapter.forward(context).

    Default path is a true pass-through (no kernel, no HBM traffic) — exactly
    the PyTorch semantics and the fastest option on v5e/v6e/v7x.  Set
    materialize=True to force an explicit materialized copy via a single
    HBM->HBM DMA.
    """
    tokens = context["text_tokens"]
    if not materialize:
        return tokens
    return _pallas_identity_copy(tokens)


if __name__ == "__main__":
    key = jax.random.PRNGKey(0)
    k_tok, k_img = jax.random.split(key)

    # Small shapes consistent with the module's usage:
    #   text_tokens: [batch=2, seq=8, hidden=32]
    text_tokens = jax.random.normal(k_tok, (2, 8, 32), dtype=jnp.float32)
    # Extra context entries (ignored by the adapter, as in PyTorch).
    image_latents = jax.random.normal(k_img, (2, 4, 16, 16), dtype=jnp.float32)

    context = {"text_tokens": text_tokens, "image_latents": image_latents}

    # Default (recommended) path: pure pass-through, no kernel launched.
    out_fast = text_token_adapter(context)
    out_fast = jax.block_until_ready(out_fast)
    assert out_fast.shape == text_tokens.shape
    assert out_fast.dtype == text_tokens.dtype
    assert bool(jnp.array_equal(out_fast, text_tokens))

    # Materialized path: single HBM->HBM DMA identity copy (exercised once).
    out_copy = text_token_adapter(context, materialize=True)
    out_copy = jax.block_until_ready(out_copy)
    assert out_copy.shape == text_tokens.shape
    assert out_copy.dtype == text_tokens.dtype
    assert bool(jnp.array_equal(out_copy, text_tokens))

    # Also exercise the DMA copy on a bf16 tensor (common production dtype for
    # text tokens) to confirm the path is dtype-agnostic.
    tokens_bf16 = text_tokens.astype(jnp.bfloat16)
    out_bf16 = text_token_adapter({"text_tokens": tokens_bf16}, materialize=True)
    out_bf16 = jax.block_until_ready(out_bf16)
    assert out_bf16.dtype == jnp.bfloat16
    assert bool(jnp.array_equal(out_bf16, tokens_bf16))

    print("KERNEL_OK")
</pallas_src>

<mosaic_0001>
module attributes {stable_mosaic.version = 11 : i64} {
  func.func @_dma_copy_kernel(%arg0: memref<2x8x32xf32, #tpu.memory_space<any>>, %arg1: memref<2x8x32xf32, #tpu.memory_space<any>>, %arg2: memref<!tpu.dma_semaphore, #tpu.memory_space<semaphore_mem>>) attributes {dimension_semantics = [], scalar_prefetch = 0 : i64, scratch_operands = 1 : i64, tpu.core_type = #tpu.core_type<tc>} {
    tpu.enqueue_dma source(%arg0 : memref<2x8x32xf32, #tpu.memory_space<any>>) target(%arg1 : memref<2x8x32xf32, #tpu.memory_space<any>>) target_semaphore(%arg2 : memref<!tpu.dma_semaphore, #tpu.memory_space<semaphore_mem>>)
    tpu.wait_dma2 semaphore(%arg2 : memref<!tpu.dma_semaphore, #tpu.memory_space<semaphore_mem>>) src(%arg0 : memref<2x8x32xf32, #tpu.memory_space<any>>) dst(%arg1 : memref<2x8x32xf32, #tpu.memory_space<any>>)
    return
  }
}

</mosaic_0001>

<llo_original>
// kernel: tpu_custom_call.1
$region0: #{tpu_custom_call.1}
  #allocation0 [shape = 'u32[]', space=smem, size = 0x4, offset = 0x4, fixed_abs, tag = 'smem constant byte address 0x4 - core index']
  #allocation1 [shape = 'u32[144,128]{1,0:T(1,128)}', space=vmem, size = 0x12000, scoped, tag = 'internal scratch']
  #allocation2 [shape = 's32[1]{0}', space=sflag, size = 0x4, scoped, tag = 'scratch operand']
  #allocation3 [shape = 's32[]', space=sflag, size = 0x4, offset = 0, fixed_abs, tag = 'sflag constant byte address 0x0 - dummy sync flag']
  #allocation4 [shape = 'u32[0]{0}', space=smem, size = 0, offset = 0, fixed_abs, tag = 'smem constant byte address 0x0 - null']
  %s0 = inlined_call_operand.hbm [shape: f32[2,8,32], index: 0, kind: input, shape index: {}]
  %s1 = inlined_call_operand.hbm [shape: f32[2,8,32], index: 1, kind: output, shape index: {}]
  %s2 = sld [smem:[#allocation0]]
  $region2: #{tpu_custom_call.1} parent=0
    _
  %s4 = ssub.s32 1, %s2
  %s5 = scalar_select 0, %s4, %s2
  %s7 = sshll.u32 1, 14
  %s8 = sxor.u32 4294967295, %s7
  %12 = dma.general %s0, 256, %s1, [#allocation2], 131072, [#allocation4], 0, 0
  %s13 = smul.u32 2, 8
  %s14 = smul.u32 %s13, 1
  %s15 = sshll.u32 %s14, 4
  %16 = dma.done [#allocation2], %s15
  %17 = vsyncmov [#allocation2]
  %s18 = vpop.sfrf %17
  %p19 = scmp.eq.s32.totalorder %s18, 0
  %p20 = pneg %p19
  %22 = shalt.err (%p20)

</llo_original>
